<compile_context>
chip_gen: v5e
topology: v5e:2x2
jax: 0.10.0
libtpu: 0.0.40
codegen_flags: <defaults>
</compile_context>

<pallas_src>
import functools
import math

import jax
import jax.numpy as jnp
from jax import lax
from jax.experimental import pallas as pl
from jax.experimental.pallas import tpu as pltpu


# ---------------------------------------------------------------------------
# Dense (N, C, d1..dK) layout kernel: classes on sublanes, flattened spatial
# on lanes.  Lane-wise accumulation into per-(batch, outer-spatial) resident
# f32 rows; the single cross-lane reduce happens once in the wrapper.
# ---------------------------------------------------------------------------
def _focal_loss_nchw_kernel(alpha_ref, x_ref, y_ref, sum_ref, cnt_ref, *,
                            gamma, ignore_index, block_m, total_m):
    jo = pl.program_id(1)                       # outer spatial (parallel)
    ji = pl.program_id(2)                       # inner spatial (accumulation)

    @pl.when(ji == 0)
    def _():
        sum_ref[...] = jnp.zeros_like(sum_ref)
        cnt_ref[...] = jnp.zeros_like(cnt_ref)

    x = x_ref[...].astype(jnp.float32)          # (1, C, TM) logits
    y = y_ref[...]                              # (1, 1, TM) int32 labels
    _, c, tm = x.shape

    # Valid = label != ignore_index AND lane within the real spatial extent
    # (the last tile may be ragged; its out-of-range lanes hold garbage).
    blk = jo * pl.num_programs(2) + ji
    pos = blk * block_m + lax.broadcasted_iota(jnp.int32, (1, 1, tm), 2)
    valid = (y != ignore_index) & (pos < total_m)           # (1, 1, TM)
    y_safe = jnp.where(valid, y, 0)

    # Softmax pieces over the class (sublane) axis; gather the target class
    # via one-hot select BEFORE forming full log-probs (saves a (C,TM) sub
    # and an EUP exp per tile).
    m = jnp.max(x, axis=1, keepdims=True)                   # (1, 1, TM)
    z = x - m
    ez = jnp.exp(z)
    sum_ez = jnp.sum(ez, axis=1, keepdims=True)

    cls = lax.broadcasted_iota(jnp.int32, (1, c, tm), 1)
    onehot = cls == y_safe                                  # (1, C, TM)
    z_y = jnp.sum(jnp.where(onehot, z, 0.0), axis=1, keepdims=True)
    ez_y = jnp.sum(jnp.where(onehot, ez, 0.0), axis=1, keepdims=True)
    alpha = alpha_ref[...].astype(jnp.float32)              # (1, C, 1)
    alpha_y = jnp.sum(jnp.where(onehot, alpha, 0.0), axis=1, keepdims=True)

    log_pt = z_y - jnp.log(sum_ez)
    pt = ez_y / sum_ez
    ce = -alpha_y * log_pt             # NLLLoss(weight=alpha, reduction='none')
    om = jnp.maximum(1.0 - pt, 0.0)    # clamp: pt can round slightly above 1.0
    if gamma == 2.0:                   # common case: no EUP pow (exp o log)
        focal = om * om
    elif gamma == 1.0:
        focal = om
    elif gamma == 0.0:
        focal = jnp.ones_like(om)
    else:
        focal = om ** gamma
    loss = jnp.where(valid, focal * ce, 0.0)                # (1, 1, TM)

    # Lane-wise (pure VPU) accumulation into the resident output block.
    sum_ref[...] += loss
    cnt_ref[...] += valid.astype(jnp.float32)


# ---------------------------------------------------------------------------
# 2-D (B, C) classification kernel: batch rows on sublanes, classes on lanes.
# No wrapper transpose; per-row losses written to lane-1 output columns and
# reduced in the wrapper (output bytes are ~1/C of input bytes).
# ---------------------------------------------------------------------------
def _focal_loss_2d_kernel(alpha_ref, x_ref, y_ref, loss_ref, cnt_ref, *,
                          gamma, ignore_index, block_b, total_b):
    i = pl.program_id(0)
    x = x_ref[...].astype(jnp.float32)          # (TB, C)
    y = y_ref[...]                              # (TB, 1)
    tb, c = x.shape

    row = i * block_b + lax.broadcasted_iota(jnp.int32, (tb, 1), 0)
    valid = (y != ignore_index) & (row < total_b)           # (TB, 1)
    y_safe = jnp.where(valid, y, 0)

    m = jnp.max(x, axis=1, keepdims=True)                   # (TB, 1)
    z = x - m
    ez = jnp.exp(z)
    sum_ez = jnp.sum(ez, axis=1, keepdims=True)

    cls = lax.broadcasted_iota(jnp.int32, (tb, c), 1)
    onehot = cls == y_safe                                  # (TB, C)
    z_y = jnp.sum(jnp.where(onehot, z, 0.0), axis=1, keepdims=True)
    ez_y = jnp.sum(jnp.where(onehot, ez, 0.0), axis=1, keepdims=True)
    alpha = alpha_ref[...].astype(jnp.float32)              # (1, C)
    alpha_y = jnp.sum(jnp.where(onehot, alpha, 0.0), axis=1, keepdims=True)

    log_pt = z_y - jnp.log(sum_ez)
    pt = ez_y / sum_ez
    ce = -alpha_y * log_pt
    om = jnp.maximum(1.0 - pt, 0.0)
    if gamma == 2.0:
        focal = om * om
    elif gamma == 1.0:
        focal = om
    elif gamma == 0.0:
        focal = jnp.ones_like(om)
    else:
        focal = om ** gamma

    loss_ref[...] = jnp.where(valid, focal * ce, 0.0)
    cnt_ref[...] = valid.astype(jnp.float32)


def _tpu_budgets():
    """(per-buffer byte target, resident-VMEM budget, scoped-VMEM limit)."""
    kind = ""
    try:
        kind = jax.devices()[0].device_kind.lower()
    except Exception:
        pass
    if ("v5 lite" in kind) or ("v5e" in kind) or ("v5lite" in kind):
        # 0.82 TB/s HBM: ~1-2 MiB/step already saturates; 128 MiB physical VMEM.
        return 2 << 20, 20 << 20, 64 << 20
    if "v7" in kind:
        # 3.2 TB/s HBM wants big steps, but only 64 MiB physical VMEM per TC.
        return 6 << 20, 24 << 20, 40 << 20
    # v6e / v4 / unknown: 128 MiB physical VMEM, ~1.4 TB/s HBM.
    return 4 << 20, 32 << 20, 64 << 20


def focal_loss(x, y, *, alpha=None, gamma=2.0, reduction="mean",
               ignore_index=-100, block_m=None):
    """Matches FocalLoss.forward from the PyTorch reference (mean/sum)."""
    if reduction not in ("mean", "sum", "none"):
        raise ValueError('Reduction must be one of: "mean", "sum", "none".')
    if reduction == "none":
        # TODO(synk): reduction='none' returns a dynamically-shaped (num-valid,)
        # vector after boolean compaction of ignored labels; not expressible in
        # a fixed-shape Pallas kernel.
        raise NotImplementedError("reduction='none' not supported in the kernel")

    y = y.astype(jnp.int32)
    target_bytes, vmem_budget, vmem_limit = _tpu_budgets()
    itemsize = jnp.dtype(x.dtype).itemsize
    c = x.shape[1]
    if alpha is None:
        alpha = jnp.ones((c,), jnp.float32)
    alpha = jnp.asarray(alpha, jnp.float32)

    if x.ndim > 2:
        # (N, C, d1..dK) -> (N, C, M): free reshape; classes on sublanes,
        # flattened spatial on lanes.  No transpose, no dtype copy.
        n = x.shape[0]
        hw = math.prod(x.shape[2:])
        x3 = x.reshape(n, c, hw)
        y3 = y.reshape(n, 1, hw)
        alpha3 = alpha.reshape(1, c, 1)

        # Bytes resident per lane column: double-buffered logits + labels and
        # the two (double-buffered) f32 accumulator output blocks.
        resident_per_lane = 2 * (c * itemsize + 4) + 4 * 4
        bm = max(target_bytes // (c * itemsize), 128) if block_m is None else int(block_m)
        bm = min(bm, max(vmem_budget // resident_per_lane, 128))
        if hw <= bm:
            bm = hw                               # one tile == full extent
        else:
            bm = max(128, (bm // 128) * 128)      # ragged last tile masked in-kernel

        num_blocks = -(-hw // bm)
        # v7x megacore: when batch gives no parallelism, split the spatial
        # axis into (outer parallel, inner arbitrary) with disjoint accumulator
        # rows.  No-op on single-TC v5e/v6e.
        j_outer = 2 if (n == 1 and num_blocks >= 2 and num_blocks % 2 == 0) else 1
        n_inner = num_blocks // j_outer

        kernel = functools.partial(_focal_loss_nchw_kernel, gamma=float(gamma),
                                   ignore_index=int(ignore_index),
                                   block_m=bm, total_m=hw)

        total, count = pl.pallas_call(
            kernel,
            out_shape=(jax.ShapeDtypeStruct((n * j_outer, 1, bm), jnp.float32),
                       jax.ShapeDtypeStruct((n * j_outer, 1, bm), jnp.float32)),
            grid_spec=pltpu.PrefetchScalarGridSpec(
                num_scalar_prefetch=0,
                grid=(n, j_outer, n_inner),
                in_specs=[
                    pl.BlockSpec((1, c, 1), lambda g, jo, ji: (0, 0, 0)),     # alpha
                    pl.BlockSpec((1, c, bm),
                                 lambda g, jo, ji: (g, 0, jo * n_inner + ji)),  # logits
                    pl.BlockSpec((1, 1, bm),
                                 lambda g, jo, ji: (g, 0, jo * n_inner + ji)),  # labels
                ],
                out_specs=(
                    pl.BlockSpec((1, 1, bm),
                                 lambda g, jo, ji: (g * j_outer + jo, 0, 0)),
                    pl.BlockSpec((1, 1, bm),
                                 lambda g, jo, ji: (g * j_outer + jo, 0, 0)),
                ),
            ),
            compiler_params=pltpu.CompilerParams(
                dimension_semantics=("parallel", "parallel", "arbitrary"),
                vmem_limit_bytes=vmem_limit),
        )(alpha3, x3, y3)

        s = jnp.sum(total)
        nvalid = jnp.sum(count)
    else:
        # (B, C): batch rows on sublanes, classes on lanes — transpose-free.
        b = x.shape[0]
        y2 = y.reshape(b, 1)
        alpha2 = alpha.reshape(1, c)

        resident_per_row = 2 * (c * itemsize + 4) + 4 * 4
        tb = max(target_bytes // (c * itemsize), 8) if block_m is None else int(block_m)
        tb = min(tb, max(vmem_budget // resident_per_row, 8))
        if b <= tb:
            tb = b
        else:
            tb = max(8, (tb // 8) * 8)
        num_blocks = -(-b // tb)
        b_pad = num_blocks * tb                   # padded output (masked rows write 0)

        kernel = functools.partial(_focal_loss_2d_kernel, gamma=float(gamma),
                                   ignore_index=int(ignore_index),
                                   block_b=tb, total_b=b)

        loss_rows, cnt_rows = pl.pallas_call(
            kernel,
            out_shape=(jax.ShapeDtypeStruct((b_pad, 1), jnp.float32),
                       jax.ShapeDtypeStruct((b_pad, 1), jnp.float32)),
            grid_spec=pltpu.PrefetchScalarGridSpec(
                num_scalar_prefetch=0,
                grid=(num_blocks,),
                in_specs=[
                    pl.BlockSpec((1, c), lambda i: (0, 0)),      # alpha
                    pl.BlockSpec((tb, c), lambda i: (i, 0)),     # logits rows
                    pl.BlockSpec((tb, 1), lambda i: (i, 0)),     # labels
                ],
                out_specs=(
                    pl.BlockSpec((tb, 1), lambda i: (i, 0)),
                    pl.BlockSpec((tb, 1), lambda i: (i, 0)),
                ),
            ),
            compiler_params=pltpu.CompilerParams(
                dimension_semantics=("parallel",),
                vmem_limit_bytes=vmem_limit),
        )(alpha2, x, y2)

        s = jnp.sum(loss_rows)
        nvalid = jnp.sum(cnt_rows)

    if reduction == "mean":
        # PyTorch ref: unweighted mean over valid rows (NLLLoss reduction='none'
        # then .mean()); returns 0.0 when there are no valid rows (matches the
        # explicit `if len(y) == 0: return 0.0` in the reference forward).
        return jnp.where(nvalid > 0, s / jnp.maximum(nvalid, 1.0), jnp.float32(0.0))
    return s   # "sum": s is already 0.0 when there are no valid rows


def _ref_focal_loss(x, y, alpha, gamma, ignore_index, reduction="mean"):
    """Pure-JAX reference mirroring the PyTorch forward."""
    c = x.shape[1]
    if x.ndim > 2:
        perm = (0,) + tuple(range(2, x.ndim)) + (1,)
        xf = jnp.transpose(x, perm).reshape(-1, c)
        yf = y.reshape(-1)
    else:
        xf, yf = x, y
    xf = xf.astype(jnp.float32)
    yf = yf.astype(jnp.int32)
    if alpha is None:
        alpha = jnp.ones((c,), jnp.float32)
    valid = yf != ignore_index
    y_safe = jnp.where(valid, yf, 0)
    log_p = jax.nn.log_softmax(xf, axis=-1)
    log_pt = jnp.take_along_axis(log_p, y_safe[:, None], axis=1)[:, 0]
    ce = -alpha[y_safe] * log_pt
    pt = jnp.exp(log_pt)
    loss = jnp.where(valid, (1.0 - pt) ** gamma * ce, 0.0)
    if reduction == "mean":
        return jnp.sum(loss) / jnp.sum(valid)
    return jnp.sum(loss)


if __name__ == "__main__":
    key = jax.random.PRNGKey(0)
    keys = jax.random.split(key, 12)

    ignore_index = -100
    gamma = 2.0

    # Case 1: NCHW logits, per-class alpha, mean reduction, auto tile size.
    N, C, H, W = 2, 4, 16, 16
    x = jax.random.normal(keys[0], (N, C, H, W), dtype=jnp.float32)
    y = jax.random.randint(keys[1], (N, H, W), 0, C, dtype=jnp.int32)
    y = jnp.where(jax.random.bernoulli(keys[2], 0.1, (N, H, W)), ignore_index, y)
    alpha = jnp.linspace(0.5, 1.5, C).astype(jnp.float32)

    out = focal_loss(x, y, alpha=alpha, gamma=gamma, reduction="mean",
                     ignore_index=ignore_index)
    out = jax.block_until_ready(out)
    ref = jax.block_until_ready(
        _ref_focal_loss(x, y, alpha, gamma, ignore_index, "mean"))
    assert jnp.allclose(out, ref, rtol=1e-4, atol=1e-6), (out, ref)

    # Case 2: ragged spatial extent (18x18) + tiny tile to exercise multi-step
    # accumulation and the in-kernel bounds mask; alpha=None, sum reduction.
    N2, C2, H2, W2 = 2, 4, 18, 18
    x2 = jax.random.normal(keys[3], (N2, C2, H2, W2), dtype=jnp.float32)
    y2 = jax.random.randint(keys[4], (N2, H2, W2), 0, C2, dtype=jnp.int32)
    y2 = jnp.where(jax.random.bernoulli(keys[5], 0.1, (N2, H2, W2)), ignore_index, y2)

    out2 = focal_loss(x2, y2, alpha=None, gamma=gamma, reduction="sum",
                      ignore_index=ignore_index, block_m=128)
    out2 = jax.block_until_ready(out2)
    ref2 = jax.block_until_ready(
        _ref_focal_loss(x2, y2, None, gamma, ignore_index, "sum"))
    assert jnp.allclose(out2, ref2, rtol=1e-4, atol=1e-5), (out2, ref2)

    # Case 3: N==1 with an even number of spatial blocks -> exercises the
    # split (outer parallel, inner arbitrary) spatial grid (v7x megacore path).
    N3, C3, H3, W3 = 1, 4, 32, 32
    x3 = jax.random.normal(keys[6], (N3, C3, H3, W3), dtype=jnp.float32)
    y3 = jax.random.randint(keys[7], (N3, H3, W3), 0, C3, dtype=jnp.int32)
    y3 = jnp.where(jax.random.bernoulli(keys[8], 0.1, (N3, H3, W3)), ignore_index, y3)

    out3 = focal_loss(x3, y3, alpha=alpha, gamma=gamma, reduction="mean",
                      ignore_index=ignore_index, block_m=256)
    out3 = jax.block_until_ready(out3)
    ref3 = jax.block_until_ready(
        _ref_focal_loss(x3, y3, alpha, gamma, ignore_index, "mean"))
    assert jnp.allclose(out3, ref3, rtol=1e-4, atol=1e-6), (out3, ref3)

    # Case 4: 2-D (B, C) classification path (no wrapper transpose), ragged
    # row blocks, per-class alpha, mean reduction.
    B4, C4 = 50, 10
    x4 = jax.random.normal(keys[9], (B4, C4), dtype=jnp.float32)
    y4 = jax.random.randint(keys[10], (B4,), 0, C4, dtype=jnp.int32)
    y4 = jnp.where(jax.random.bernoulli(keys[11], 0.1, (B4,)), ignore_index, y4)
    alpha4 = jnp.linspace(0.5, 1.5, C4).astype(jnp.float32)

    out4 = focal_loss(x4, y4, alpha=alpha4, gamma=gamma, reduction="mean",
                      ignore_index=ignore_index, block_m=16)
    out4 = jax.block_until_ready(out4)
    ref4 = jax.block_until_ready(
        _ref_focal_loss(x4, y4, alpha4, gamma, ignore_index, "mean"))
    assert jnp.allclose(out4, ref4, rtol=1e-4, atol=1e-6), (out4, ref4)

    print("KERNEL_OK")
</pallas_src>

<mosaic_0001>
module attributes {stable_mosaic.version = 11 : i64} {
  func.func @_focal_loss_nchw_kernel(%arg0: i32, %arg1: i32, %arg2: i32, %arg3: memref<1x4x1xf32, #tpu.memory_space<vmem>>, %arg4: memref<1x4x256xf32, #tpu.memory_space<vmem>>, %arg5: memref<1x1x256xi32, #tpu.memory_space<vmem>>, %arg6: memref<1x1x256xf32, #tpu.memory_space<vmem>>, %arg7: memref<1x1x256xf32, #tpu.memory_space<vmem>>) attributes {dimension_semantics = [#tpu.dimension_semantics<parallel>, #tpu.dimension_semantics<parallel>, #tpu.dimension_semantics<arbitrary>], iteration_bounds = array<i64: 2, 1, 1>, scalar_prefetch = 0 : i64, scratch_operands = 0 : i64, tpu.core_type = #tpu.core_type<tc>, window_params = [{pipeline_mode = #tpu.pipeline_mode<synchronous>, transform_indices = @transform_0, window_bounds = array<i64: 1, 4, 1>}, {transform_indices = @transform_1, window_bounds = array<i64: 1, 4, 256>}, {transform_indices = @transform_2, window_bounds = array<i64: 1, 1, 256>}, {transform_indices = @transform_3, window_bounds = array<i64: 1, 1, 256>}, {transform_indices = @transform_4, window_bounds = array<i64: 1, 1, 256>}]} {
    %c0_i32 = arith.constant 0 : i32
    %0 = arith.cmpi eq, %arg2, %c0_i32 : i32
    %1 = arith.extui %0 : i1 to i32
    %c0_i32_0 = arith.constant 0 : i32
    %2 = arith.cmpi ne, %1, %c0_i32_0 : i32
    scf.if %2 {
      %cst_34 = arith.constant 0.000000e+00 : f32
      %65 = vector.broadcast %cst_34 : f32 to vector<1x1x256xf32>
      %c0_35 = arith.constant 0 : index
      %c0_36 = arith.constant 0 : index
      %c0_37 = arith.constant 0 : index
      %66 = vector.load %arg6[%c0_35, %c0_36, %c0_37] : memref<1x1x256xf32, #tpu.memory_space<vmem>>, vector<1x1x256xf32>
      tpu.vector_store %arg6[%c0_35, %c0_36, %c0_37], %65 {strides = array<i32>} : memref<1x1x256xf32, #tpu.memory_space<vmem>>, vector<1x1x256xf32>,
      %cst_38 = arith.constant 0.000000e+00 : f32
      %67 = vector.broadcast %cst_38 : f32 to vector<1x1x256xf32>
      %c0_39 = arith.constant 0 : index
      %c0_40 = arith.constant 0 : index
      %c0_41 = arith.constant 0 : index
      %68 = vector.load %arg7[%c0_39, %c0_40, %c0_41] : memref<1x1x256xf32, #tpu.memory_space<vmem>>, vector<1x1x256xf32>
      tpu.vector_store %arg7[%c0_39, %c0_40, %c0_41], %67 {strides = array<i32>} : memref<1x1x256xf32, #tpu.memory_space<vmem>>, vector<1x1x256xf32>,
    } else {
    }
    %c0 = arith.constant 0 : index
    %c0_1 = arith.constant 0 : index
    %c0_2 = arith.constant 0 : index
    %3 = vector.load %arg4[%c0, %c0_1, %c0_2] : memref<1x4x256xf32, #tpu.memory_space<vmem>>, vector<1x4x256xf32>
    %c0_3 = arith.constant 0 : index
    %c0_4 = arith.constant 0 : index
    %c0_5 = arith.constant 0 : index
    %4 = vector.load %arg5[%c0_3, %c0_4, %c0_5] : memref<1x1x256xi32, #tpu.memory_space<vmem>>, vector<1x1x256xi32>
    %c1_i32 = arith.constant 1 : i32
    %5 = arith.muli %arg1, %c1_i32 : i32
    %6 = arith.addi %5, %arg2 : i32
    %c256_i32 = arith.constant 256 : i32
    %7 = arith.muli %6, %c256_i32 : i32
    %8 = tpu.iota {dimensions = array<i32: 2>} : vector<1x1x256xi32>
    %9 = vector.broadcast %7 : i32 to vector<1x1x256xi32>
    %10 = arith.addi %9, %8 : vector<1x1x256xi32>
    %c-100_i32 = arith.constant -100 : i32
    %11 = vector.broadcast %c-100_i32 : i32 to vector<1x1x256xi32>
    %12 = arith.cmpi ne, %4, %11 : vector<1x1x256xi32>
    %c256_i32_6 = arith.constant 256 : i32
    %13 = vector.broadcast %c256_i32_6 : i32 to vector<1x1x256xi32>
    %14 = arith.cmpi slt, %10, %13 : vector<1x1x256xi32>
    %15 = arith.andi %12, %14 : vector<1x1x256xi1>
    %c0_i32_7 = arith.constant 0 : i32
    %16 = vector.broadcast %c0_i32_7 : i32 to vector<1x1x256xi32>
    %17 = arith.select %15, %4, %16 : vector<1x1x256xi1>, vector<1x1x256xi32>
    %cst = arith.constant dense<0xFF800000> : vector<1x256xf32>
    %18 = vector.multi_reduction <maximumf>, %3, %cst [1] : vector<1x4x256xf32> to vector<1x256xf32>
    %19 = vector.shape_cast %18 : vector<1x256xf32> to vector<1x1x256xf32>
    %20 = vector.broadcast %19 : vector<1x1x256xf32> to vector<1x4x256xf32>
    %21 = arith.subf %3, %20 : vector<1x4x256xf32>
    %22 = math.exp %21 : vector<1x4x256xf32>
    %cst_8 = arith.constant dense<0.000000e+00> : vector<1x256xf32>
    %23 = vector.multi_reduction <add>, %22, %cst_8 [1] : vector<1x4x256xf32> to vector<1x256xf32>
    %24 = vector.shape_cast %23 : vector<1x256xf32> to vector<1x1x256xf32>
    %25 = tpu.iota {dimensions = array<i32: 1>} : vector<1x4x256xi32>
    %26 = vector.broadcast %17 : vector<1x1x256xi32> to vector<1x4x256xi32>
    %27 = arith.cmpi eq, %25, %26 : vector<1x4x256xi32>
    %cst_9 = arith.constant 0.000000e+00 : f32
    %28 = vector.broadcast %cst_9 : f32 to vector<1x4x256xf32>
    %29 = arith.select %27, %21, %28 : vector<1x4x256xi1>, vector<1x4x256xf32>
    %cst_10 = arith.constant dense<0.000000e+00> : vector<1x256xf32>
    %30 = vector.multi_reduction <add>, %29, %cst_10 [1] : vector<1x4x256xf32> to vector<1x256xf32>
    %31 = vector.shape_cast %30 : vector<1x256xf32> to vector<1x1x256xf32>
    %cst_11 = arith.constant 0.000000e+00 : f32
    %32 = vector.broadcast %cst_11 : f32 to vector<1x4x256xf32>
    %33 = arith.select %27, %22, %32 : vector<1x4x256xi1>, vector<1x4x256xf32>
    %cst_12 = arith.constant dense<0.000000e+00> : vector<1x256xf32>
    %34 = vector.multi_reduction <add>, %33, %cst_12 [1] : vector<1x4x256xf32> to vector<1x256xf32>
    %35 = vector.shape_cast %34 : vector<1x256xf32> to vector<1x1x256xf32>
    %c0_13 = arith.constant 0 : index
    %c0_14 = arith.constant 0 : index
    %c0_15 = arith.constant 0 : index
    %36 = vector.load %arg3[%c0_13, %c0_14, %c0_15] : memref<1x4x1xf32, #tpu.memory_space<vmem>>, vector<1x4x1xf32>
    %cst_16 = arith.constant 0.000000e+00 : f32
    %37 = vector.shape_cast %36 : vector<1x4x1xf32> to vector<1x4x1xf32>
    %38 = vector.broadcast %37 : vector<1x4x1xf32> to vector<1x4x256xf32>
    %39 = vector.broadcast %cst_16 : f32 to vector<1x4x256xf32>
    %40 = arith.select %27, %38, %39 : vector<1x4x256xi1>, vector<1x4x256xf32>
    %cst_17 = arith.constant dense<0.000000e+00> : vector<1x256xf32>
    %41 = vector.multi_reduction <add>, %40, %cst_17 [1] : vector<1x4x256xf32> to vector<1x256xf32>
    %42 = vector.shape_cast %41 : vector<1x256xf32> to vector<1x1x256xf32>
    %43 = math.log %24 : vector<1x1x256xf32>
    %44 = arith.subf %31, %43 : vector<1x1x256xf32>
    %45 = arith.divf %35, %24 : vector<1x1x256xf32>
    %cst_18 = arith.constant 0.000000e+00 : f32
    %46 = vector.broadcast %cst_18 : f32 to vector<1x1x256xf32>
    %47 = arith.subf %46, %42 : vector<1x1x256xf32>
    %48 = arith.mulf %47, %44 : vector<1x1x256xf32>
    %cst_19 = arith.constant 1.000000e+00 : f32
    %49 = vector.broadcast %cst_19 : f32 to vector<1x1x256xf32>
    %50 = arith.subf %49, %45 : vector<1x1x256xf32>
    %cst_20 = arith.constant 0.000000e+00 : f32
    %51 = vector.broadcast %cst_20 : f32 to vector<1x1x256xf32>
    %52 = arith.maximumf %50, %51 : vector<1x1x256xf32>
    %53 = arith.mulf %52, %52 : vector<1x1x256xf32>
    %54 = arith.mulf %53, %48 : vector<1x1x256xf32>
    %cst_21 = arith.constant 0.000000e+00 : f32
    %55 = vector.broadcast %cst_21 : f32 to vector<1x1x256xf32>
    %56 = arith.select %15, %54, %55 : vector<1x1x256xi1>, vector<1x1x256xf32>
    %c0_22 = arith.constant 0 : index
    %c0_23 = arith.constant 0 : index
    %c0_24 = arith.constant 0 : index
    %57 = vector.load %arg6[%c0_22, %c0_23, %c0_24] : memref<1x1x256xf32, #tpu.memory_space<vmem>>, vector<1x1x256xf32>
    %58 = arith.addf %57, %56 : vector<1x1x256xf32>
    %c0_25 = arith.constant 0 : index
    %c0_26 = arith.constant 0 : index
    %c0_27 = arith.constant 0 : index
    %59 = vector.load %arg6[%c0_25, %c0_26, %c0_27] : memref<1x1x256xf32, #tpu.memory_space<vmem>>, vector<1x1x256xf32>
    tpu.vector_store %arg6[%c0_25, %c0_26, %c0_27], %58 {strides = array<i32>} : memref<1x1x256xf32, #tpu.memory_space<vmem>>, vector<1x1x256xf32>,
    %c0_28 = arith.constant 0 : index
    %c0_29 = arith.constant 0 : index
    %c0_30 = arith.constant 0 : index
    %60 = vector.load %arg7[%c0_28, %c0_29, %c0_30] : memref<1x1x256xf32, #tpu.memory_space<vmem>>, vector<1x1x256xf32>
    %61 = arith.extui %15 : vector<1x1x256xi1> to vector<1x1x256xi32>
    %62 = arith.sitofp %61 : vector<1x1x256xi32> to vector<1x1x256xf32>
    %63 = arith.addf %60, %62 : vector<1x1x256xf32>
    %c0_31 = arith.constant 0 : index
    %c0_32 = arith.constant 0 : index
    %c0_33 = arith.constant 0 : index
    %64 = vector.load %arg7[%c0_31, %c0_32, %c0_33] : memref<1x1x256xf32, #tpu.memory_space<vmem>>, vector<1x1x256xf32>
    tpu.vector_store %arg7[%c0_31, %c0_32, %c0_33], %63 {strides = array<i32>} : memref<1x1x256xf32, #tpu.memory_space<vmem>>, vector<1x1x256xf32>,
    return
  }
  func.func @transform_0(%arg0: i32, %arg1: i32, %arg2: i32) -> (i32, i32, i32) {
    %c0_i32 = arith.constant 0 : i32
    %c0_i32_0 = arith.constant 0 : i32
    %c0_i32_1 = arith.constant 0 : i32
    %c0_i32_2 = arith.constant 0 : i32
    return %c0_i32, %c0_i32_0, %c0_i32_1 : i32, i32, i32
  }
  func.func @transform_1(%arg0: i32, %arg1: i32, %arg2: i32) -> (i32, i32, i32) {
    %c1_i32 = arith.constant 1 : i32
    %0 = arith.muli %arg1, %c1_i32 : i32
    %1 = arith.addi %0, %arg2 : i32
    %c0_i32 = arith.constant 0 : i32
    %c0_i32_0 = arith.constant 0 : i32
    return %arg0, %c0_i32, %1 : i32, i32, i32
  }
  func.func @transform_2(%arg0: i32, %arg1: i32, %arg2: i32) -> (i32, i32, i32) {
    %c1_i32 = arith.constant 1 : i32
    %0 = arith.muli %arg1, %c1_i32 : i32
    %1 = arith.addi %0, %arg2 : i32
    %c0_i32 = arith.constant 0 : i32
    %c0_i32_0 = arith.constant 0 : i32
    return %arg0, %c0_i32, %1 : i32, i32, i32
  }
  func.func @transform_3(%arg0: i32, %arg1: i32, %arg2: i32) -> (i32, i32, i32) {
    %c1_i32 = arith.constant 1 : i32
    %0 = arith.muli %arg0, %c1_i32 : i32
    %1 = arith.addi %0, %arg1 : i32
    %c0_i32 = arith.constant 0 : i32
    %c0_i32_0 = arith.constant 0 : i32
    %c0_i32_1 = arith.constant 0 : i32
    return %1, %c0_i32, %c0_i32_0 : i32, i32, i32
  }
  func.func @transform_4(%arg0: i32, %arg1: i32, %arg2: i32) -> (i32, i32, i32) {
    %c1_i32 = arith.constant 1 : i32
    %0 = arith.muli %arg0, %c1_i32 : i32
    %1 = arith.addi %0, %arg1 : i32
    %c0_i32 = arith.constant 0 : i32
    %c0_i32_0 = arith.constant 0 : i32
    %c0_i32_1 = arith.constant 0 : i32
    return %1, %c0_i32, %c0_i32_0 : i32, i32, i32
  }
}

</mosaic_0001>

<llo_original>
// kernel: tpu_custom_call.1
$region0: #{tpu_custom_call.1}
  #allocation0 [shape = 'u32[]', space=smem, size = 0x4, offset = 0x4, fixed_abs, tag = 'smem constant byte address 0x4 - core index']
  #allocation1 [shape = 'u32[72,128]{1,0:T(1,128)}', space=vmem, size = 0x9000, scoped, tag = 'internal scratch']
  %s0 = inlined_call_operand.vmem [shape: f32[1,4,1], index: 0, kind: input, shape index: {}]
  %s1 = inlined_call_operand.hbm [shape: f32[2,4,256], index: 1, kind: input, shape index: {}]
  %s2 = inlined_call_operand.vmem [shape: s32[2,1,256], index: 2, kind: input, shape index: {}]
  %s3 = inlined_call_operand.hbm [shape: f32[2,1,256], index: 3, kind: output, shape index: {0}]
  %s4 = inlined_call_operand.hbm [shape: f32[2,1,256], index: 4, kind: output, shape index: {1}]
  %5 = xla_tuple %s3, %s4
  %s6 = sld [smem:[#allocation0]]
  $region61: #{tpu_custom_call.1} parent=0
    _
  %s8 = ssub.s32 1, %s6
  %s9 = scalar_select 0, %s8, %s6
  $region1: #{tpu_custom_call.1} parent=0
    #allocation2 [shape = 'u8[8192]{0}', space=vmem, size = 0x2000, scoped, tag = 'input window, operand 1']
    #allocation3 [shape = 's32[2]{0}', space=sflag, size = 0x8, scoped, tag = 'scoped memory for tpu_custom_call.1']
    #allocation4 [shape = 's32[2]{0}', space=sflag, size = 0x8, scoped, tag = 'scoped memory for tpu_custom_call.1']
    #allocation5 [shape = 'u8[2048]{0}', space=vmem, size = 0x800, scoped, tag = 'output window, operand 0']
    #allocation6 [shape = 'u8[2048]{0}', space=vmem, size = 0x800, scoped, tag = 'output window, operand 1']
    #allocation7 [shape = 's32[2]{0}', space=sflag, size = 0x8, scoped, tag = 'scoped memory for tpu_custom_call.1']
    %10 = vsyncpa [#allocation3], 0
    %s11 = scalar_lea.sflag [#allocation3], 1
    %12 = vsyncpa %s11, 0
    %13 = vsyncpa [#allocation4], 0
    %s14 = scalar_lea.sflag [#allocation4], 1
    %15 = vsyncpa %s14, 0
    %16 = vsyncpa [#allocation7], 0
    %s17 = scalar_lea.sflag [#allocation7], 1
    %18 = vsyncpa %s17, 0
    loop: start=0, step=1, limit=4
    $region2: #{tpu_custom_call.1} parent=1 // loop_pre_header
      _
    $region3: #{tpu_custom_call.1} parent=1 // loop_header
      %s20 = sphi 0, %s24
      %p21 = scmp.ge.s32.totalorder %s20, 4
      %s27 = sphi 0, %s46
      %s28 = sphi 0, %s42
      %s29 = sphi 0, %s38
      %s30 = sphi 0, %s27
      %s31 = sphi 0, %s28
      %s32 = sphi 0, %s29
      %s33 = sphi 0, %s30
      %s34 = sphi 0, %s31
      %s35 = sphi 0, %s32
      %s47 = sphi 0, %s47
      %s49 = sphi 0, %s47
      %s50 = sphi 0, %s49
      %s64 = sphi 0, %s50
      %s74 = sphi 0, %s76
      %s77 = sphi 0, %s74
      %s78 = sphi 0, %s77
      %s94 = sphi 0, %s78
      %s104 = sphi 0, %s106
      %s107 = sphi 0, %s104
      %s108 = sphi 0, %s107
      %s124 = sphi 0, %s108
      %s132 = sphi 0, %s134
      %s135 = sphi 0, %s132
      %s136 = sphi 0, %s135
      %s152 = sphi 0, %s136
      %s160 = sphi 0, %s162
      %s163 = sphi 0, %s160
      %s164 = sphi 0, %s163
      %s180 = sphi 0, %s164
    $region4: #{tpu_custom_call.1} parent=1 // loop_header_branch
      %23 = sbr.rel (%p21) target = $region8
    $region5: #{tpu_custom_call.1} parent=1 // loop_body
      %s25 = ssub.s32 %s20, 1
      %s26 = ssub.s32 %s20, 2
      %s36 = sadd.s32 1, %s29
      %p37 = scmp.ge.s32.totalorder %s36, 1
      %s38 = scalar_select %p37, 0, %s36
      %s39 = sadd.s32 1, %s28
      %s40 = scalar_select %p37, %s39, %s28
      %p41 = scmp.ge.s32.totalorder %s40, 1
      %s42 = scalar_select %p41, 0, %s40
      %s43 = sadd.s32 1, %s27
      %s44 = scalar_select %p41, %s43, %s27
      %p45 = scmp.ge.s32.totalorder %s44, 2
      %s46 = scalar_select %p45, 0, %s44
      %s48 = sadd.s32 %s47, 1
      %p51 = scmp.eq.s32.totalorder %s20, 1
      %p52 = scmp.ne.s32.totalorder %s47, %s49
      %p53 = scmp.eq.s32.totalorder %s20, 0
      %p54 = por %p52, %p53
      %p55 = scmp.ne.s32.totalorder %s47, %s49
      %p56 = scmp.eq.s32.totalorder %s25, 1
      %p57 = por %p55, %p56
      %p58 = scmp.ne.s32.totalorder %s49, %s50
      %p59 = scmp.eq.s32.totalorder %s25, 0
      %p60 = por %p58, %p59
      %p61 = scmp.ne.s32.totalorder %s49, %s50
      %p62 = scmp.eq.s32.totalorder %s26, 1
      %p63 = por %p61, %p62
      %p65 = scmp.ne.s32.totalorder %s50, %s64
      %p66 = scmp.eq.s32.totalorder %s26, 0
      %p67 = por %p65, %p66
      %s68 = sadd.s32 %s28, %s29
      %s69 = sadd.s32 %s42, %s38
      %s70 = ssub.s32 %s27, %s46
      %s71 = ssub.s32 %s68, %s69
      %s72 = sor.u32 %s70, %s71
      %p73 = scmp.eq.s32.totalorder %s72, 0
      %s75 = sadd.s32 %s74, 1
      %s76 = scalar_select %p73, %s74, %s75
      %p79 = pneg %p73
      %p80 = scmp.eq.s32.totalorder %s20, 1
      %p81 = por %p79, %p80
      %p82 = scmp.ne.s32.totalorder %s74, %s77
      %p83 = scmp.eq.s32.totalorder %s20, 0
      %p84 = por %p82, %p83
      %p85 = scmp.ne.s32.totalorder %s74, %s77
      %p86 = scmp.eq.s32.totalorder %s25, 1
      %p87 = por %p85, %p86
      %p88 = scmp.ne.s32.totalorder %s77, %s78
      %p89 = scmp.eq.s32.totalorder %s25, 0
      %p90 = por %p88, %p89
      %p91 = scmp.ne.s32.totalorder %s77, %s78
      %p92 = scmp.eq.s32.totalorder %s26, 1
      %p93 = por %p91, %p92
      %p95 = scmp.ne.s32.totalorder %s78, %s94
      %p96 = scmp.eq.s32.totalorder %s26, 0
      %p97 = por %p95, %p96
      %s98 = sadd.s32 %s28, %s29
      %s99 = sadd.s32 %s42, %s38
      %s100 = ssub.s32 %s27, %s46
      %s101 = ssub.s32 %s98, %s99
      %s102 = sor.u32 %s100, %s101
      %p103 = scmp.eq.s32.totalorder %s102, 0
      %s105 = sadd.s32 %s104, 1
      %s106 = scalar_select %p103, %s104, %s105
      %p109 = pneg %p103
      %p110 = scmp.eq.s32.totalorder %s20, 1
      %p111 = por %p109, %p110
      %p112 = scmp.ne.s32.totalorder %s104, %s107
      %p113 = scmp.eq.s32.totalorder %s20, 0
      %p114 = por %p112, %p113
      %p115 = scmp.ne.s32.totalorder %s104, %s107
      %p116 = scmp.eq.s32.totalorder %s25, 1
      %p117 = por %p115, %p116
      %p118 = scmp.ne.s32.totalorder %s107, %s108
      %p119 = scmp.eq.s32.totalorder %s25, 0
      %p120 = por %p118, %p119
      %p121 = scmp.ne.s32.totalorder %s107, %s108
      %p122 = scmp.eq.s32.totalorder %s26, 1
      %p123 = por %p121, %p122
      %p125 = scmp.ne.s32.totalorder %s108, %s124
      %p126 = scmp.eq.s32.totalorder %s26, 0
      %p127 = por %p125, %p126
      %s128 = sadd.s32 %s27, %s28
      %s129 = sadd.s32 %s46, %s42
      %s130 = ssub.s32 %s128, %s129
      %p131 = scmp.eq.s32.totalorder %s130, 0
      %s133 = sadd.s32 %s132, 1
      %s134 = scalar_select %p131, %s132, %s133
      %p137 = pneg %p131
      %p138 = scmp.eq.s32.totalorder %s20, 1
      %p139 = por %p137, %p138
      %p140 = scmp.ne.s32.totalorder %s132, %s135
      %p141 = scmp.eq.s32.totalorder %s20, 0
      %p142 = por %p140, %p141
      %p143 = scmp.ne.s32.totalorder %s132, %s135
      %p144 = scmp.eq.s32.totalorder %s25, 1
      %p145 = por %p143, %p144
      %p146 = scmp.ne.s32.totalorder %s135, %s136
      %p147 = scmp.eq.s32.totalorder %s25, 0
      %p148 = por %p146, %p147
      %p149 = scmp.ne.s32.totalorder %s135, %s136
      %p150 = scmp.eq.s32.totalorder %s26, 1
      %p151 = por %p149, %p150
      %p153 = scmp.ne.s32.totalorder %s136, %s152
      %p154 = scmp.eq.s32.totalorder %s26, 0
      %p155 = por %p153, %p154
      %s156 = sadd.s32 %s27, %s28
      %s157 = sadd.s32 %s46, %s42
      %s158 = ssub.s32 %s156, %s157
      %p159 = scmp.eq.s32.totalorder %s158, 0
      %s161 = sadd.s32 %s160, 1
      %s162 = scalar_select %p159, %s160, %s161
      %p165 = pneg %p159
      %p166 = scmp.eq.s32.totalorder %s20, 1
      %p167 = por %p165, %p166
      %p168 = scmp.ne.s32.totalorder %s160, %s163
      %p169 = scmp.eq.s32.totalorder %s20, 0
      %p170 = por %p168, %p169
      %p171 = scmp.ne.s32.totalorder %s160, %s163
      %p172 = scmp.eq.s32.totalorder %s25, 1
      %p173 = por %p171, %p172
      %p174 = scmp.ne.s32.totalorder %s163, %s164
      %p175 = scmp.eq.s32.totalorder %s25, 0
      %p176 = por %p174, %p175
      %p177 = scmp.ne.s32.totalorder %s163, %s164
      %p178 = scmp.eq.s32.totalorder %s26, 1
      %p179 = por %p177, %p178
      %p181 = scmp.ne.s32.totalorder %s164, %s180
      %p182 = scmp.eq.s32.totalorder %s26, 0
      %p183 = por %p181, %p182
      %p184 = scmp.le.s32.totalorder 1, %s20
      %p185 = scmp.lt.s32.totalorder %s20, 3
      %p186 = pnand %p184, %p185
      %p187 = pneg %p186
      // Predicated region
      $region9: #{tpu_custom_call.1} parent=5 // pred_check
        _
      $region10: #{tpu_custom_call.1} parent=5 // pred_check_branch
        %189 = sbr.rel (%p186) target = $region12
      $region11: #{tpu_custom_call.1} parent=5 // pred_region
        %s190 = ssub.s32 %s20, 1
        // Predicated region
        $region13: #{tpu_custom_call.1} parent=11 // pred_check
          %p191 = pneg %p60
        $region14: #{tpu_custom_call.1} parent=11 // pred_check_branch
          %193 = sbr.rel (%p191) target = $region16
        $region15: #{tpu_custom_call.1} parent=11 // pred_region
          _
        $region16: #{tpu_custom_call.1} parent=11 // pred_fallthru
          _
      $region12: #{tpu_custom_call.1} parent=5 // pred_fallthru
        _
      %p194 = scmp.lt.s32.totalorder %s20, 2
      // Predicated region
      $region17: #{tpu_custom_call.1} parent=5 // pred_check
        %p195 = pneg %p194
      $region18: #{tpu_custom_call.1} parent=5 // pred_check_branch
        %197 = sbr.rel (%p195) target = $region20
      $region19: #{tpu_custom_call.1} parent=5 // pred_region
        // Predicated region
        $region21: #{tpu_custom_call.1} parent=19 // pred_check
          %p198 = pneg %p84
        $region22: #{tpu_custom_call.1} parent=19 // pred_check_branch
          %200 = sbr.rel (%p198) target = $region24
        $region23: #{tpu_custom_call.1} parent=19 // pred_region
          %s201 = sand.u32 %s74, 1
          %s202 = scalar_lea.sflag [#allocation3], %s201
          %s203 = sand.u32 %s74, 1
          %s204 = smul.addr %s203, 8
          %s205 = scalar_lea.vmem [#allocation2], %s204
          %s206 = sadd.s32 %s28, %s29
          %s207 = smul.u32 2, %s206
          %209 = vsyncadd %s202, 0
          %s210 = smul.addr %s27, 2
          %s211 = sadd.s32 %s207, %s210
          %s212 = smul.addr %s211, 4
          %s213 = scalar_lea.hbm %s1, %s212
          %s215 = sshll.u32 %s213, 4
          %s216 = int_to_ptr.hbm [resolvable:$true] %s215
          %s217 = sshll.u32 %s205, 4
          %s218 = int_to_ptr.vmem [resolvable:$true] %s217
          %220 = dma.hbm_to_vmem [thread:$0]  %s216, 128, %s218, %s202
        $region24: #{tpu_custom_call.1} parent=19 // pred_fallthru
          _
        // Predicated region
        $region25: #{tpu_custom_call.1} parent=19 // pred_check
          %p221 = pneg %p114
        $region26: #{tpu_custom_call.1} parent=19 // pred_check_branch
          %223 = sbr.rel (%p221) target = $region28
        $region27: #{tpu_custom_call.1} parent=19 // pred_region
          %s224 = sadd.s32 %s28, %s29
          %s225 = smul.u32 2, %s224
          %p226 = scmp.lt.s32.totalorder %s27, 1
          %s227 = scalar_select %p226, %s27, 1
          %p228 = scmp.lt.s32.totalorder %s225, 1
          %s229 = scalar_select %p228, %s225, 1
          %s230 = smul.addr %s227, 2
          %s231 = sadd.s32 %s229, %s230
          %s232 = scalar_lea.vmem %s2, %s231
          %s233 = sadd.s32 %s28, %s29
          %s234 = smul.u32 2, %s233
        $region28: #{tpu_custom_call.1} parent=19 // pred_fallthru
          _
      $region20: #{tpu_custom_call.1} parent=5 // pred_fallthru
        _
      %p235 = scmp.le.s32.totalorder 1, %s20
      %p236 = scmp.lt.s32.totalorder %s20, 3
      %p237 = pnand %p235, %p236
      %p238 = pneg %p237
      // Predicated region
      $region29: #{tpu_custom_call.1} parent=5 // pred_check
        _
      $region30: #{tpu_custom_call.1} parent=5 // pred_check_branch
        %240 = sbr.rel (%p237) target = $region32
      $region31: #{tpu_custom_call.1} parent=5 // pred_region
        %s241 = ssub.s32 %s20, 1
        %s242 = sand.u32 %s77, 1
        %s243 = scalar_lea.sflag [#allocation3], %s242
        %s244 = sand.u32 %s77, 1
        %s245 = smul.addr %s244, 8
        %s246 = scalar_lea.vmem [#allocation2], %s245
        // Predicated region
        $region33: #{tpu_custom_call.1} parent=31 // pred_check
          %p247 = pneg %p90
        $region34: #{tpu_custom_call.1} parent=31 // pred_check_branch
          %249 = sbr.rel (%p247) target = $region36
        $region35: #{tpu_custom_call.1} parent=31 // pred_region
          %251 = dma.done %s243, 128
        $region36: #{tpu_custom_call.1} parent=31 // pred_fallthru
          _
        %p252 = pneg %p60
        %p253 = pneg %p57
        %s254 = sand.u32 %s77, 1
        %s255 = scalar_lea.sflag [#allocation3], %s254
        %s256 = sand.u32 %s77, 1
        %s257 = smul.addr %s256, 8
        %s258 = scalar_lea.vmem [#allocation2], %s257
        %p259 = pneg %p90
        %p260 = pneg %p87
        %s261 = sadd.s32 %s31, %s32
        %s262 = smul.u32 2, %s261
        %p263 = scmp.lt.s32.totalorder %s30, 1
        %s264 = scalar_select %p263, %s30, 1
        %p265 = scmp.lt.s32.totalorder %s262, 1
        %s266 = scalar_select %p265, %s262, 1
        %s267 = smul.addr %s264, 2
        %s268 = sadd.s32 %s266, %s267
        %s269 = scalar_lea.vmem %s2, %s268
        %p270 = pneg %p120
        %p271 = pneg %p117
        %p272 = pneg %p148
        %p273 = pneg %p145
        %s274 = sand.u32 %s135, 1
        %s275 = scalar_lea.sflag [#allocation4], %s274
        %s276 = sand.u32 %s135, 1
        %s277 = smul.addr %s276, 2
        %s278 = scalar_lea.vmem [#allocation5], %s277
        %p279 = pneg %p176
        %p280 = pneg %p173
        %s281 = sand.u32 %s163, 1
        %s282 = scalar_lea.sflag [#allocation7], %s281
        %s283 = sand.u32 %s163, 1
        %s284 = smul.addr %s283, 2
        %s285 = scalar_lea.vmem [#allocation6], %s284
        %s286 = sadd.s32 %s31, %s32
        %s287 = smul.u32 2, %s286
        %s288 = sadd.s32 %s31, %s32
        %s289 = smul.u32 2, %s288
        %p290 = scmp.lt.s32.totalorder %s30, 1
        %s291 = scalar_select %p290, %s30, 1
        %p292 = scmp.lt.s32.totalorder %s289, 1
        %s293 = scalar_select %p292, %s289, 1
        %s294 = smul.addr %s291, 2
        %s295 = sadd.s32 %s293, %s294
        %s296 = scalar_lea.vmem %s2, %s295
        %s297 = sadd.s32 %s31, %s32
        %s298 = smul.u32 2, %s297
        %s299 = sadd.s32 %s30, %s31
        %s300 = sadd.s32 %s30, %s31
        %p301 = scmp.eq.s32.totalorder %s32, 0
        // Predicated region
        $region37: #{tpu_custom_call.1} parent=31 // pred_check
          %p302 = pneg %p301
        $region38: #{tpu_custom_call.1} parent=31 // pred_check_branch
          %304 = sbr.rel (%p302) target = $region40
        $region39: #{tpu_custom_call.1} parent=31 // pred_region
          %v305 = vlaneseq
          %vm306 = vcmp.ge.s32.totalorder %v305, 0
          %vm307 = vcmp.lt.s32.totalorder %v305, 256
          %vm308 = vmand %vm306, %vm307
          %309 = vst.msk [vmem:[%s278] sm:$0x3] %vm308, 0.0
          %310 = vst.msk [vmem:[%s285] sm:$0x3] %vm308, 0.0
        $region40: #{tpu_custom_call.1} parent=31 // pred_fallthru
          _
        %v311 = vld [vmem:[%s246] sm:$0xff]
        %v312 = vld [vmem:[%s296] sm:$0x3]
        %s313 = sadd.s32 %s31, %s32
        %s314 = smul.u32 %s313, 256
        %v315 = vlaneseq
        %v316 = vand.u32 %v315, 127
        %v317 = vadd.s32 %v316, 128
        %v318 = vstv %s314
        %v319 = vadd.s32 %v318, %v316
        %v320 = vadd.s32 %v318, %v317
        %vm321 = vcmp.ne.s32.totalorder %v312, 4294967196
        %vm322 = vcmp.lt.s32.totalorder %v319, 256
        %vm323 = vcmp.lt.s32.totalorder %v320, 256
        %v324 = vsel %vm322, 1, 0
        %v325 = vsel %vm323, 1, 0
        %v326 = vrot.slane %v325, 7
        %vm327 = vcmask 1040384
        %v328 = vsel %vm327, %v324, %v326
        %vm329 = vcmp.ne.s32.totalorder %v328, 0
        %vm330 = vmand %vm321, %vm329
        %v331 = vsel %vm330, %v312, 0
        %333 = vst [vmem:[#allocation1] ss:$2 sm:$0xff] %v311
        %v334 = vld.sshfl [vmem:[#allocation1] sm:$0xff pattern:$0x75316420]
        %v335 = vld.sshfl [vmem:[#allocation1 + $0x8] sm:$0xff pattern:$0x75316420]
        %vm338 = vcmask 1043456
        %v339 = vsel %vm338, %v334, -inf
        %v340 = vrot.slane %v339, 4
        %v341 = vmax.f32 %v339, %v340
        %v342 = vrot.slane %v341, 2
        %v343 = vmax.f32 %v341, %v342
        %v344 = vrot.slane %v343, 1
        %v345 = vmax.f32 %v343, %v344
        %v346 = vsel %vm338, %v335, -inf
        %v347 = vrot.slane %v346, 4
        %v348 = vmax.f32 %v346, %v347
        %v349 = vrot.slane %v348, 2
        %v350 = vmax.f32 %v348, %v349
        %v351 = vrot.slane %v350, 1
        %v352 = vmax.f32 %v350, %v351
        %v355 = vrot.slane %v352, 4
        %v356 = vsel %vm338, %v345, %v355
        %v358 = vsub.f32 %v311, %v356
        %v359 = vmul.f32 %v358, 1.442695
        %v360 = vpow.pop %v359
        %362 = vst [vmem:[#allocation1] ss:$2 sm:$0xff] %v360
        %v363 = vld.sshfl [vmem:[#allocation1] sm:$0xff pattern:$0x75316420]
        %v364 = vld.sshfl [vmem:[#allocation1 + $0x8] sm:$0xff pattern:$0x75316420]
        %v367 = vsel %vm338, %v363, 0.0
        %v368 = vrot.slane %v367, 4
        %v369 = vadd.f32 %v367, %v368
        %v370 = vrot.slane %v369, 2
        %v371 = vadd.f32 %v369, %v370
        %v372 = vrot.slane %v371, 1
        %v373 = vadd.f32 %v371, %v372
        %v374 = vsel %vm338, %v364, 0.0
        %v375 = vrot.slane %v374, 4
        %v376 = vadd.f32 %v374, %v375
        %v377 = vrot.slane %v376, 2
        %v378 = vadd.f32 %v376, %v377
        %v379 = vrot.slane %v378, 1
        %v380 = vadd.f32 %v378, %v379
        %v381 = vlaneseq
        %v382 = vshrl.u32 %v381, 7
        %v383 = vperm.slane %v331, 0
        %v384 = vperm.slane %v331, 1
        %vm385 = vcmp.eq.s32.totalorder %v382, %v383
        %vm386 = vcmp.eq.s32.totalorder %v382, %v384
        %388 = vst [vmem:[#allocation1] ss:$2 sm:$0xff] %v358
        %v389 = vld.sshfl [vmem:[#allocation1] sm:$0xff pattern:$0x75316420]
        %v390 = vld.sshfl [vmem:[#allocation1 + $0x8] sm:$0xff pattern:$0x75316420]
        %v393 = vsel %vm385, %v389, 0.0
        %v394 = vsel %vm386, %v390, 0.0
        %v395 = vsel %vm338, %v393, 0.0
        %v396 = vrot.slane %v395, 4
        %v397 = vadd.f32 %v395, %v396
        %v398 = vrot.slane %v397, 2
        %v399 = vadd.f32 %v397, %v398
        %v400 = vrot.slane %v399, 1
        %v401 = vadd.f32 %v399, %v400
        %v402 = vsel %vm338, %v394, 0.0
        %v403 = vrot.slane %v402, 4
        %v404 = vadd.f32 %v402, %v403
        %v405 = vrot.slane %v404, 2
        %v406 = vadd.f32 %v404, %v405
        %v407 = vrot.slane %v406, 1
        %v408 = vadd.f32 %v406, %v407
        %409 = vst [vmem:[#allocation1] ss:$2 sm:$0xff] %v360
        %v410 = vld.sshfl [vmem:[#allocation1] sm:$0xff pattern:$0x75316420]
        %v411 = vld.sshfl [vmem:[#allocation1 + $0x8] sm:$0xff pattern:$0x75316420]
        %v414 = vsel %vm385, %v410, 0.0
        %v415 = vsel %vm386, %v411, 0.0
        %v416 = vsel %vm338, %v414, 0.0
        %v417 = vrot.slane %v416, 4
        %v418 = vadd.f32 %v416, %v417
        %v419 = vrot.slane %v418, 2
        %v420 = vadd.f32 %v418, %v419
        %v421 = vrot.slane %v420, 1
        %v422 = vadd.f32 %v420, %v421
        %v423 = vsel %vm338, %v415, 0.0
        %v424 = vrot.slane %v423, 4
        %v425 = vadd.f32 %v423, %v424
        %v426 = vrot.slane %v425, 2
        %v427 = vadd.f32 %v425, %v426
        %v428 = vrot.slane %v427, 1
        %v429 = vadd.f32 %v427, %v428
        %v430 = vld [vmem:[%s0] sm:$0xf]
        %432 = vset.pattern.permute.xlu0 0
        %433 = vperm.xlu0 %432, %v430
        %v434 = vpop.permute.xlu0 %433
        %v436 = vsel %vm385, %v434, 0.0
        %v437 = vsel %vm386, %v434, 0.0
        %v438 = vsel %vm338, %v436, 0.0
        %v439 = vrot.slane %v438, 4
        %v440 = vadd.f32 %v438, %v439
        %v441 = vrot.slane %v440, 2
        %v442 = vadd.f32 %v440, %v441
        %v443 = vrot.slane %v442, 1
        %v444 = vadd.f32 %v442, %v443
        %v445 = vsel %vm338, %v437, 0.0
        %v446 = vrot.slane %v445, 4
        %v447 = vadd.f32 %v445, %v446
        %v448 = vrot.slane %v447, 2
        %v449 = vadd.f32 %v447, %v448
        %v450 = vrot.slane %v449, 1
        %v451 = vadd.f32 %v449, %v450
        %v452 = vlog2.pop %v373
        %v453 = vmul.f32 %v452, 0.6931472
        %v454 = vlog2.pop %v380
        %v455 = vmul.f32 %v454, 0.6931472
        %v456 = vsub.f32 %v401, %v453
        %v457 = vsub.f32 %v408, %v455
        %v458 = vrcp.pop %v373
        %v459 = vmul.f32 %v373, %v458
        %v460 = vsub.f32 1.0, %v459
        %v461 = vmul.f32 %v458, %v460
        %v462 = vadd.f32 %v458, %v461
        %vm463 = vweird.f32 %v373
        %vm464 = vweird.f32 %v458
        %vm465 = vmor %vm463, %vm464
        %v466 = vsel %vm465, %v458, %v462
        %v467 = vand.u32 2147483647, %v373
        %vm468 = vcmp.eq.f32.partialorder %v467, 8.507059e+37
        %v469 = vand.u32 %v373, 2147483648
        %v470 = vor.u32 1.1754944e-38, %v469
        %v471 = vsel %vm468, %v470, %v466
        %v472 = vmul.f32 %v422, %v471
        %v473 = vrcp.pop %v380
        %v474 = vmul.f32 %v380, %v473
        %v475 = vsub.f32 1.0, %v474
        %v476 = vmul.f32 %v473, %v475
        %v477 = vadd.f32 %v473, %v476
        %vm478 = vweird.f32 %v380
        %vm479 = vweird.f32 %v473
        %vm480 = vmor %vm478, %vm479
        %v481 = vsel %vm480, %v473, %v477
        %v482 = vand.u32 2147483647, %v380
        %vm483 = vcmp.eq.f32.partialorder %v482, 8.507059e+37
        %v484 = vand.u32 %v380, 2147483648
        %v485 = vor.u32 1.1754944e-38, %v484
        %v486 = vsel %vm483, %v485, %v481
        %v487 = vmul.f32 %v429, %v486
        %v488 = vsub.f32 0.0, %v444
        %v489 = vsub.f32 0.0, %v451
        %v490 = vmul.f32 %v488, %v456
        %v491 = vmul.f32 %v489, %v457
        %v492 = vsub.f32 1.0, %v472
        %v493 = vsub.f32 1.0, %v487
        %v494 = vmax.f32 %v492, 0.0
        %v495 = vmax.f32 %v493, 0.0
        %v496 = vmul.f32 %v494, %v494
        %v497 = vmul.f32 %v495, %v495
        %v498 = vmul.f32 %v496, %v490
        %v499 = vmul.f32 %v497, %v491
        %v502 = vrot.slane %v499, 7
        %v503 = vsel %vm327, %v498, %v502
        %v505 = vsel %vm330, %v503, 0.0
        %v506 = vld [vmem:[%s278] sm:$0x3]
        %v507 = vadd.f32 %v506, %v505
        %v508 = vlaneseq
        %vm509 = vcmp.ge.s32.totalorder %v508, 0
        %vm510 = vcmp.lt.s32.totalorder %v508, 256
        %vm511 = vmand %vm509, %vm510
        %512 = vst.msk [vmem:[%s278] sm:$0x3] %vm511, %v507
        %v513 = vld [vmem:[%s285] sm:$0x3]
        %v514 = vsel %vm330, 1, 0
        %v515 = vcvt.s32.f32 %v514
        %v516 = vadd.f32 %v513, %v515
        %517 = vst.msk [vmem:[%s285] sm:$0x3] %vm511, %v516
        %s518 = sand.u32 %s135, 1
        %s519 = scalar_lea.sflag [#allocation4], %s518
        %s520 = sand.u32 %s135, 1
        %s521 = smul.addr %s520, 2
        %s522 = scalar_lea.vmem [#allocation5], %s521
        %s523 = sand.u32 %s163, 1
        %s524 = scalar_lea.sflag [#allocation7], %s523
        %s525 = sand.u32 %s163, 1
        %s526 = smul.addr %s525, 2
        %s527 = scalar_lea.vmem [#allocation6], %s526
        // Predicated region
        $region41: #{tpu_custom_call.1} parent=31 // pred_check
          %p528 = pneg %p145
        $region42: #{tpu_custom_call.1} parent=31 // pred_check_branch
          %530 = sbr.rel (%p528) target = $region44
        $region43: #{tpu_custom_call.1} parent=31 // pred_region
          %s531 = sadd.s32 %s30, %s31
          %533 = vsyncadd %s519, 0
          %s534 = smul.addr %s531, 2
          %s535 = scalar_lea.hbm %s3, %s534
          %s537 = sshll.u32 %s522, 4
          %s538 = int_to_ptr.vmem [resolvable:$true] %s537
          %s539 = sshll.u32 %s535, 4
          %s540 = int_to_ptr.hbm [resolvable:$true] %s539
          %542 = dma.vmem_to_hbm [thread:$0]  %s538, 32, %s540, %s519
        $region44: #{tpu_custom_call.1} parent=31 // pred_fallthru
          _
        // Predicated region
        $region45: #{tpu_custom_call.1} parent=31 // pred_check
          %p543 = pneg %p173
        $region46: #{tpu_custom_call.1} parent=31 // pred_check_branch
          %545 = sbr.rel (%p543) target = $region48
        $region47: #{tpu_custom_call.1} parent=31 // pred_region
          %s546 = sadd.s32 %s30, %s31
          %548 = vsyncadd %s524, 0
          %s549 = smul.addr %s546, 2
          %s550 = scalar_lea.hbm %s4, %s549
          %s552 = sshll.u32 %s527, 4
          %s553 = int_to_ptr.vmem [resolvable:$true] %s552
          %s554 = sshll.u32 %s550, 4
          %s555 = int_to_ptr.hbm [resolvable:$true] %s554
          %557 = dma.vmem_to_hbm [thread:$0]  %s553, 32, %s555, %s524
        $region48: #{tpu_custom_call.1} parent=31 // pred_fallthru
          _
      $region32: #{tpu_custom_call.1} parent=5 // pred_fallthru
        _
      %p558 = scmp.le.s32.totalorder 2, %s20
      // Predicated region
      $region49: #{tpu_custom_call.1} parent=5 // pred_check
        %p559 = pneg %p558
      $region50: #{tpu_custom_call.1} parent=5 // pred_check_branch
        %561 = sbr.rel (%p559) target = $region52
      $region51: #{tpu_custom_call.1} parent=5 // pred_region
        %s562 = ssub.s32 %s20, 2
        // Predicated region
        $region53: #{tpu_custom_call.1} parent=51 // pred_check
          %p563 = pneg %p151
        $region54: #{tpu_custom_call.1} parent=51 // pred_check_branch
          %565 = sbr.rel (%p563) target = $region56
        $region55: #{tpu_custom_call.1} parent=51 // pred_region
          %s566 = sand.u32 %s136, 1
          %s567 = scalar_lea.sflag [#allocation4], %s566
          %s568 = sand.u32 %s136, 1
          %s569 = smul.addr %s568, 2
          %s570 = scalar_lea.vmem [#allocation5], %s569
          %572 = dma.done %s567, 32
        $region56: #{tpu_custom_call.1} parent=51 // pred_fallthru
          _
        // Predicated region
        $region57: #{tpu_custom_call.1} parent=51 // pred_check
          %p573 = pneg %p179
        $region58: #{tpu_custom_call.1} parent=51 // pred_check_branch
          %575 = sbr.rel (%p573) target = $region60
        $region59: #{tpu_custom_call.1} parent=51 // pred_region
          %s576 = sand.u32 %s164, 1
          %s577 = scalar_lea.sflag [#allocation7], %s576
          %s578 = sand.u32 %s164, 1
          %s579 = smul.addr %s578, 2
          %s580 = scalar_lea.vmem [#allocation6], %s579
          %582 = dma.done %s577, 32
        $region60: #{tpu_custom_call.1} parent=51 // pred_fallthru
          _
      $region52: #{tpu_custom_call.1} parent=5 // pred_fallthru
        _
    $region6: #{tpu_custom_call.1} parent=1 // loop_footer
      %s24 = sadd.s32 1, %s20
    $region7: #{tpu_custom_call.1} parent=1 // loop_footer_branch
      %19 = sbr.rel target = $region3
    $region8: #{tpu_custom_call.1} parent=1 // loop_exit
      _
    %583 = vsyncpa [#allocation3], 1
    %s584 = scalar_lea.sflag [#allocation3], 1
    %585 = vsyncpa %s584, 1
    %586 = vsyncpa [#allocation4], 1
    %s587 = scalar_lea.sflag [#allocation4], 1
    %588 = vsyncpa %s587, 1
    %589 = vsyncpa [#allocation7], 1
    %s590 = scalar_lea.sflag [#allocation7], 1
    %591 = vsyncpa %s590, 1

</llo_original>
